<compile_context>
chip_gen: v7x
topology: tpu7x:2x2x1
jax: 0.10.0
libtpu: 0.0.40
codegen_flags: <defaults>
</compile_context>

<pallas_src>
import functools

import jax
import jax.numpy as jnp
from jax.experimental import pallas as pl
from jax.experimental.pallas import tpu as pltpu


def _round_up(n, m):
    return ((n + m - 1) // m) * m


def _classifier_kernel(*refs, apply_mask):
    """One batch tile: optional dropout scale, then logits = x @ W_t + b."""
    if apply_mask:
        mask_ref, x_ref, w_ref, b_ref, o_ref = refs
        x = x_ref[...] * mask_ref[...]          # mask already holds 1/(1-p) scale
    else:
        x_ref, w_ref, b_ref, o_ref = refs
        x = x_ref[...]

    # Native-dtype operands into the MXU, f32 accumulation.
    logits = jnp.dot(x, w_ref[...], preferred_element_type=jnp.float32)
    logits = logits + b_ref[...].astype(jnp.float32)
    o_ref[...] = logits.astype(o_ref.dtype)


def classifier_forward(x, weight, bias, labels=None, *, key=None, p=0.5,
                       training=False, block_b=256):
    """x: [B, F] features. weight: [C, F] (PyTorch Linear layout). bias: [C]."""
    B, F = x.shape
    C = weight.shape[0]
    assert weight.shape == (C, F) and bias.shape == (C,)

    w_t = weight.T                      # glue: [F, C] -> plain x @ W_t matmul
    b2 = bias.reshape(1, C)             # glue: 2-D for TPU layout

    # Batch tiling: large MXU-friendly tiles, 8-aligned sublanes, padded tail.
    blk = min(block_b, _round_up(B, 8))
    Bp = _round_up(B, blk)
    xp = x if Bp == B else jnp.pad(x, ((0, Bp - B), (0, 0)))

    inputs = []
    in_specs = []
    if training:
        if key is None:
            key = jax.random.PRNGKey(0)
        # Inverted dropout: keep w.p. (1-p), scale kept activations by 1/(1-p).
        keep = jax.random.bernoulli(key, 1.0 - p, (Bp, F))
        mask = keep.astype(x.dtype) * jnp.asarray(1.0 / (1.0 - p), x.dtype)
        inputs.append(mask)
        in_specs.append(pl.BlockSpec((blk, F), lambda i: (i, 0)))

    inputs += [xp, w_t, b2]
    in_specs += [
        pl.BlockSpec((blk, F), lambda i: (i, 0)),   # x tile
        pl.BlockSpec((F, C), lambda i: (0, 0)),     # W^T (resident)
        pl.BlockSpec((1, C), lambda i: (0, 0)),     # bias
    ]

    # Explicit VMEM budget: resident weight (double-buffered worst case) +
    # double-buffered x/mask/out tiles + slack.  For very large F*C on v7x
    # (64 MiB physical VMEM) add a K/C grid axis instead of raising this.
    itemsize = x.dtype.itemsize
    vmem_bytes = int(
        2 * w_t.size * w_t.dtype.itemsize
        + 2 * blk * F * itemsize * (2 if training else 1)
        + 2 * blk * C * itemsize
        + 2 * C * itemsize
        + (2 << 20))
    vmem_limit = max(vmem_bytes, 32 * 1024 * 1024)

    kernel = functools.partial(_classifier_kernel, apply_mask=training)

    out = pl.pallas_call(
        kernel,
        out_shape=jax.ShapeDtypeStruct((Bp, C), x.dtype),
        grid_spec=pl.GridSpec(
            grid=(Bp // blk,),
            in_specs=in_specs,
            out_specs=pl.BlockSpec((blk, C), lambda i: (i, 0)),
        ),
        compiler_params=pltpu.CompilerParams(
            dimension_semantics=("parallel",),      # batch tiles independent
            vmem_limit_bytes=vmem_limit),
    )(*inputs)

    logits = out[:B] if Bp != B else out
    if labels is not None:
        return logits, jax.lax.stop_gradient(labels)   # labels.detach()
    return logits


if __name__ == "__main__":
    # Small shapes implied by the forward: [B, feature_dim] -> [B, num_classes].
    B, FEATURE_DIM, NUM_CLASSES = 16, 256, 128

    key = jax.random.PRNGKey(0)
    kx, kw, kb, kd = jax.random.split(key, 4)

    x = jax.random.normal(kx, (B, FEATURE_DIM), dtype=jnp.float32)
    bound = 1.0 / (FEATURE_DIM ** 0.5)
    weight = jax.random.uniform(kw, (NUM_CLASSES, FEATURE_DIM),
                                minval=-bound, maxval=bound, dtype=jnp.float32)
    bias = jax.random.uniform(kb, (NUM_CLASSES,),
                              minval=-bound, maxval=bound, dtype=jnp.float32)
    labels = jnp.arange(B, dtype=jnp.int32) % NUM_CLASSES

    # Eval-mode forward (dropout = identity) vs plain JAX reference.
    logits, out_labels = classifier_forward(x, weight, bias, labels,
                                            training=False)
    logits = jax.block_until_ready(logits)
    ref = x @ weight.T + bias
    assert logits.shape == (B, NUM_CLASSES)
    assert out_labels.shape == (B,)
    assert jnp.allclose(logits, ref, atol=1e-5, rtol=1e-5), "eval mismatch"

    # Training-mode forward: same key reproduces the same dropout mask.
    logits_tr, _ = classifier_forward(x, weight, bias, labels,
                                      key=kd, training=True)
    logits_tr = jax.block_until_ready(logits_tr)
    keep = jax.random.bernoulli(kd, 0.5, (B, FEATURE_DIM))
    ref_tr = (x * keep.astype(jnp.float32) * 2.0) @ weight.T + bias
    assert jnp.allclose(logits_tr, ref_tr, atol=1e-4, rtol=1e-4), "train mismatch"

    print("KERNEL_OK")
</pallas_src>

<mosaic_0001>
module attributes {stable_mosaic.version = 11 : i64} {
  func.func @_classifier_kernel(%arg0: i32, %arg1: memref<16x256xf32, #tpu.memory_space<vmem>>, %arg2: memref<256x128xf32, #tpu.memory_space<vmem>>, %arg3: memref<1x128xf32, #tpu.memory_space<vmem>>, %arg4: memref<16x128xf32, #tpu.memory_space<vmem>>) attributes {dimension_semantics = [#tpu.dimension_semantics<parallel>], iteration_bounds = array<i64: 1>, scalar_prefetch = 0 : i64, scratch_operands = 0 : i64, tpu.core_type = #tpu.core_type<tc>, window_params = [{transform_indices = @transform_0, window_bounds = array<i64: 16, 256>}, {pipeline_mode = #tpu.pipeline_mode<synchronous>, transform_indices = @transform_1, window_bounds = array<i64: 256, 128>}, {pipeline_mode = #tpu.pipeline_mode<synchronous>, transform_indices = @transform_2, window_bounds = array<i64: 1, 128>}, {transform_indices = @transform_3, window_bounds = array<i64: 16, 128>}]} {
    %c0 = arith.constant 0 : index
    %c0_0 = arith.constant 0 : index
    %0 = vector.load %arg1[%c0, %c0_0] : memref<16x256xf32, #tpu.memory_space<vmem>>, vector<16x256xf32>
    %c0_1 = arith.constant 0 : index
    %c0_2 = arith.constant 0 : index
    %1 = vector.load %arg2[%c0_1, %c0_2] : memref<256x128xf32, #tpu.memory_space<vmem>>, vector<256x128xf32>
    %cst = arith.constant dense<0.000000e+00> : vector<16x128xf32>
    %2 = tpu.matmul %0, %1, %cst {dimension_numbers = #tpu.dot_dimension_numbers<[1], [0], [0], [1], [0, 0, 1, 1], [], []>} : vector<16x256xf32>, vector<256x128xf32>, vector<16x128xf32> -> vector<16x128xf32>
    %c0_3 = arith.constant 0 : index
    %c0_4 = arith.constant 0 : index
    %3 = vector.load %arg3[%c0_3, %c0_4] : memref<1x128xf32, #tpu.memory_space<vmem>>, vector<1x128xf32>
    %4 = vector.broadcast %3 : vector<1x128xf32> to vector<16x128xf32>
    %5 = arith.addf %2, %4 : vector<16x128xf32>
    %c0_5 = arith.constant 0 : index
    %c0_6 = arith.constant 0 : index
    %6 = vector.load %arg4[%c0_5, %c0_6] : memref<16x128xf32, #tpu.memory_space<vmem>>, vector<16x128xf32>
    tpu.vector_store %arg4[%c0_5, %c0_6], %5 {strides = array<i32>} : memref<16x128xf32, #tpu.memory_space<vmem>>, vector<16x128xf32>,
    return
  }
  func.func @transform_0(%arg0: i32) -> (i32, i32) {
    %c0_i32 = arith.constant 0 : i32
    %c0_i32_0 = arith.constant 0 : i32
    return %arg0, %c0_i32 : i32, i32
  }
  func.func @transform_1(%arg0: i32) -> (i32, i32) {
    %c0_i32 = arith.constant 0 : i32
    %c0_i32_0 = arith.constant 0 : i32
    %c0_i32_1 = arith.constant 0 : i32
    return %c0_i32, %c0_i32_0 : i32, i32
  }
  func.func @transform_2(%arg0: i32) -> (i32, i32) {
    %c0_i32 = arith.constant 0 : i32
    %c0_i32_0 = arith.constant 0 : i32
    %c0_i32_1 = arith.constant 0 : i32
    return %c0_i32, %c0_i32_0 : i32, i32
  }
  func.func @transform_3(%arg0: i32) -> (i32, i32) {
    %c0_i32 = arith.constant 0 : i32
    %c0_i32_0 = arith.constant 0 : i32
    return %arg0, %c0_i32 : i32, i32
  }
}

</mosaic_0001>

<llo_original>
// kernel: tpu_custom_call.1
$region0: #{tpu_custom_call.1}
  #allocation0 [shape = 'u32[]', space=smem, size = 0x4, offset = 0x4, fixed_abs, tag = 'smem constant byte address 0x4 - core index']
  #allocation1 [shape = 'u32[144,128]{1,0:T(1,128)}', space=vmem, size = 0x12000, scoped, tag = 'internal scratch']
  %s0 = inlined_call_operand.hbm [shape: f32[16,256], index: 0, kind: input, shape index: {}]
  %s1 = inlined_call_operand.hbm [shape: f32[256,128], index: 1, kind: input, shape index: {}]
  %s2 = inlined_call_operand.vmem [shape: f32[1,128], index: 2, kind: input, shape index: {}]
  %s3 = inlined_call_operand.hbm [shape: f32[16,128], index: 3, kind: output, shape index: {}]
  %s4 = sld [smem:[#allocation0]]
  $region30: #{tpu_custom_call.1} parent=0
    _
  %s6 = ssub.s32 1, %s4
  %s7 = scalar_select 0, %s6, %s4
  $region1: #{tpu_custom_call.1} parent=0
    #allocation2 [shape = 'u8[16384]{0}', space=vmem, size = 0x4000, scoped, tag = 'input window, operand 0, single buffered']
    #allocation3 [shape = 's32[1]{0}', space=sflag, size = 0x4, scoped, tag = 'scoped memory for tpu_custom_call.1']
    #allocation4 [shape = 's32[1]{0}', space=sflag, size = 0x4, scoped, tag = 'scoped memory for tpu_custom_call.1']
    #allocation5 [shape = 'u8[131072]{0}', space=vmem, size = 0x20000, scoped, tag = 'input window, operand 1, single buffered']
    #allocation6 [shape = 's32[1]{0}', space=sflag, size = 0x4, scoped, tag = 'scoped memory for tpu_custom_call.1']
    #allocation7 [shape = 'u8[8192]{0}', space=vmem, size = 0x2000, scoped, tag = 'output window, operand 0, single buffered']
    %8 = vsyncpa [#allocation3], 0
    %9 = vsyncpa [#allocation6], 0
    %10 = vsyncpa [#allocation4], 0
    // Predicated region
    $region2: #{tpu_custom_call.1} parent=1 // pred_check
      _
    $region3: #{tpu_custom_call.1} parent=1 // pred_check_branch
      %12 = sbr.rel (0) target = $region5
    $region4: #{tpu_custom_call.1} parent=1 // pred_region
      %s14 = ssub.s32 512, 512
      %15 = vsyncadd [#allocation3], %s14
      %s16 = sshll.u32 [#allocation2], 4
      %s17 = int_to_ptr.vmem [resolvable:$true] %s16
      %22 = dma.hbm_to_vmem [thread:$0]  %s0, 512, %s17, [#allocation3], 256, 256, 16
    $region5: #{tpu_custom_call.1} parent=1 // pred_fallthru
      _
    // Predicated region
    $region6: #{tpu_custom_call.1} parent=1 // pred_check
      _
    $region7: #{tpu_custom_call.1} parent=1 // pred_check_branch
      %24 = sbr.rel (0) target = $region9
    $region8: #{tpu_custom_call.1} parent=1 // pred_region
      %s26 = ssub.s32 4096, 4096
      %27 = vsyncadd [#allocation6], %s26
      %s28 = sshll.u32 [#allocation5], 4
      %s29 = int_to_ptr.vmem [resolvable:$true] %s28
      %34 = dma.hbm_to_vmem [thread:$0]  %s1, 4096, %s29, [#allocation6], 128, 128, 8
    $region9: #{tpu_custom_call.1} parent=1 // pred_fallthru
      _
    // Predicated region
    $region10: #{tpu_custom_call.1} parent=1 // pred_check
      _
    $region11: #{tpu_custom_call.1} parent=1 // pred_check_branch
      %36 = sbr.rel (0) target = $region13
    $region12: #{tpu_custom_call.1} parent=1 // pred_region
      _
    $region13: #{tpu_custom_call.1} parent=1 // pred_fallthru
      _
    // Predicated region
    $region14: #{tpu_custom_call.1} parent=1 // pred_check
      _
    $region15: #{tpu_custom_call.1} parent=1 // pred_check_branch
      %38 = sbr.rel (0) target = $region17
    $region16: #{tpu_custom_call.1} parent=1 // pred_region
      %39 = dma.done [#allocation3], 512
    $region17: #{tpu_custom_call.1} parent=1 // pred_fallthru
      _
    // Predicated region
    $region18: #{tpu_custom_call.1} parent=1 // pred_check
      _
    $region19: #{tpu_custom_call.1} parent=1 // pred_check_branch
      %41 = sbr.rel (0) target = $region21
    $region20: #{tpu_custom_call.1} parent=1 // pred_region
      %42 = dma.done [#allocation6], 4096
    $region21: #{tpu_custom_call.1} parent=1 // pred_fallthru
      _
    %v43 = vld [vmem:[#allocation2] sm:$0xff]
    %v44 = vld [vmem:[#allocation2 + $0x8] sm:$0xff]
    %v45 = vld [vmem:[#allocation2 + $0x10] sm:$0xff]
    %v46 = vld [vmem:[#allocation2 + $0x18] sm:$0xff]
    %v47 = vld [vmem:[#allocation5] sm:$0xff]
    %v48 = vld [vmem:[#allocation5 + $0x8] sm:$0xff]
    %v49 = vld [vmem:[#allocation5 + $0x10] sm:$0xff]
    %v50 = vld [vmem:[#allocation5 + $0x18] sm:$0xff]
    %v51 = vld [vmem:[#allocation5 + $0x20] sm:$0xff]
    %v52 = vld [vmem:[#allocation5 + $0x28] sm:$0xff]
    %v53 = vld [vmem:[#allocation5 + $0x30] sm:$0xff]
    %v54 = vld [vmem:[#allocation5 + $0x38] sm:$0xff]
    %v55 = vld [vmem:[#allocation5 + $0x40] sm:$0xff]
    %v56 = vld [vmem:[#allocation5 + $0x48] sm:$0xff]
    %v57 = vld [vmem:[#allocation5 + $0x50] sm:$0xff]
    %v58 = vld [vmem:[#allocation5 + $0x58] sm:$0xff]
    %v59 = vld [vmem:[#allocation5 + $0x60] sm:$0xff]
    %v60 = vld [vmem:[#allocation5 + $0x68] sm:$0xff]
    %v61 = vld [vmem:[#allocation5 + $0x70] sm:$0xff]
    %v62 = vld [vmem:[#allocation5 + $0x78] sm:$0xff]
    %v63 = vld [vmem:[#allocation5 + $0x80] sm:$0xff]
    %v64 = vld [vmem:[#allocation5 + $0x88] sm:$0xff]
    %v65 = vld [vmem:[#allocation5 + $0x90] sm:$0xff]
    %v66 = vld [vmem:[#allocation5 + $0x98] sm:$0xff]
    %v67 = vld [vmem:[#allocation5 + $0xa0] sm:$0xff]
    %v68 = vld [vmem:[#allocation5 + $0xa8] sm:$0xff]
    %v69 = vld [vmem:[#allocation5 + $0xb0] sm:$0xff]
    %v70 = vld [vmem:[#allocation5 + $0xb8] sm:$0xff]
    %v71 = vld [vmem:[#allocation5 + $0xc0] sm:$0xff]
    %v72 = vld [vmem:[#allocation5 + $0xc8] sm:$0xff]
    %v73 = vld [vmem:[#allocation5 + $0xd0] sm:$0xff]
    %v74 = vld [vmem:[#allocation5 + $0xd8] sm:$0xff]
    %v75 = vld [vmem:[#allocation5 + $0xe0] sm:$0xff]
    %v76 = vld [vmem:[#allocation5 + $0xe8] sm:$0xff]
    %v77 = vld [vmem:[#allocation5 + $0xf0] sm:$0xff]
    %v78 = vld [vmem:[#allocation5 + $0xf8] sm:$0xff]
    %v79 = vld [vmem:[%s2] sm:$0x1]
    %v81 = vlaneseq
    %v82 = vshrl.u32 %v81, 7
    %v83 = vsub.s32 0, %v82
    %v84 = vrot.slane %v79, %v83
    %86 = vmatprep.subr.mxu0 0.0
    %87 = vmatpush1.msra.mxu0 %v47
    %88 = vmatprep.subr.mxu0 0.0
    %89 = vmatpush1.msra.mxu0 %v48
    %90 = vmatprep.subr.mxu0 0.0
    %91 = vmatpush1.msra.mxu0 %v49
    %92 = vmatprep.subr.mxu0 0.0
    %93 = vmatpush1.msra.mxu0 %v50
    %94 = vmatprep.subr.mxu0 0.0
    %95 = vmatpush1.msra.mxu0 %v51
    %96 = vmatprep.subr.mxu0 0.0
    %97 = vmatpush1.msra.mxu0 %v52
    %98 = vmatprep.subr.mxu0 0.0
    %99 = vmatpush1.msra.mxu0 %v53
    %100 = vmatprep.subr.mxu0 0.0
    %101 = vmatpush1.msra.mxu0 %v54
    %102 = vmatprep.subr.mxu0 0.0
    %103 = vmatpush1.msra.mxu0 %v55
    %104 = vmatprep.subr.mxu0 0.0
    %105 = vmatpush1.msra.mxu0 %v56
    %106 = vmatprep.subr.mxu0 0.0
    %107 = vmatpush1.msra.mxu0 %v57
    %108 = vmatprep.subr.mxu0 0.0
    %109 = vmatpush1.msra.mxu0 %v58
    %110 = vmatprep.subr.mxu0 0.0
    %111 = vmatpush1.msra.mxu0 %v59
    %112 = vmatprep.subr.mxu0 0.0
    %113 = vmatpush1.msra.mxu0 %v60
    %114 = vmatprep.subr.mxu0 0.0
    %115 = vmatpush1.msra.mxu0 %v61
    %116 = vmatprep.subr.mxu0 0.0
    %117 = vmatpush1.msra.mxu0 %v62
    %118 = vmatprep.subr.mxu0 0.0
    %119 = vmatpush1.msra.mxu0 %v63
    %120 = vmatprep.subr.mxu0 0.0
    %121 = vmatpush1.msra.mxu0 %v64
    %122 = vmatprep.subr.mxu0 0.0
    %123 = vmatpush1.msra.mxu0 %v65
    %124 = vmatprep.subr.mxu0 0.0
    %125 = vmatpush1.msra.mxu0 %v66
    %126 = vmatprep.subr.mxu0 0.0
    %127 = vmatpush1.msra.mxu0 %v67
    %128 = vmatprep.subr.mxu0 0.0
    %129 = vmatpush1.msra.mxu0 %v68
    %130 = vmatprep.subr.mxu0 0.0
    %131 = vmatpush1.msra.mxu0 %v69
    %132 = vmatprep.subr.mxu0 0.0
    %133 = vmatpush1.msra.mxu0 %v70
    %134 = vmatprep.subr.mxu0 0.0
    %135 = vmatpush1.msra.mxu0 %v71
    %136 = vmatprep.subr.mxu0 0.0
    %137 = vmatpush1.msra.mxu0 %v72
    %138 = vmatprep.subr.mxu0 0.0
    %139 = vmatpush1.msra.mxu0 %v73
    %140 = vmatprep.subr.mxu0 0.0
    %141 = vmatpush1.msra.mxu0 %v74
    %142 = vmatprep.subr.mxu0 0.0
    %143 = vmatpush1.msra.mxu0 %v75
    %144 = vmatprep.subr.mxu0 0.0
    %145 = vmatpush1.msra.mxu0 %v76
    %146 = vmatprep.subr.mxu0 0.0
    %147 = vmatpush1.msra.mxu0 %v77
    %148 = vmatprep.subr.mxu0 0.0
    %149 = vmatpush1.msra.mxu0 %v78
    %150 = vmatprep.mubr.f32.mxu0 %v44
    %151 = vmatmul.mubr.f32.gmra.mrb[0].mxu0 %v43
    %v152 = vpop.f32.mrb[0].mxu0
    %v153 = vadd.f32 %v84, %v152
    %v154 = vpop.f32.mrb[0].mxu0
    %155 = vmatprep.mubr.f32.mxu0 %v46
    %156 = vmatmul.mubr.f32.gmra.mrb[0].mxu0 %v45
    %v157 = vpop.f32.mrb[0].mxu0
    %v158 = vadd.f32 %v84, %v157
    %v159 = vpop.f32.mrb[0].mxu0
    %160 = vdwg.mxu0
    %161 = vst [vmem:[#allocation7] sm:$0xff] %v153
    %162 = vst [vmem:[#allocation7 + $0x8] sm:$0xff] %v158
    // Predicated region
    $region22: #{tpu_custom_call.1} parent=1 // pred_check
      _
    $region23: #{tpu_custom_call.1} parent=1 // pred_check_branch
      %164 = sbr.rel (0) target = $region25
    $region24: #{tpu_custom_call.1} parent=1 // pred_region
      %s166 = ssub.s32 256, 256
      %167 = vsyncadd [#allocation4], %s166
      %s168 = sshll.u32 [#allocation7], 4
      %s169 = int_to_ptr.vmem [resolvable:$true] %s168
      %174 = dma.vmem_to_hbm [thread:$0]  %s169, 256, %s3, [#allocation4], 128, 128, 8
    $region25: #{tpu_custom_call.1} parent=1 // pred_fallthru
      _
    // Predicated region
    $region26: #{tpu_custom_call.1} parent=1 // pred_check
      _
    $region27: #{tpu_custom_call.1} parent=1 // pred_check_branch
      %176 = sbr.rel (0) target = $region29
    $region28: #{tpu_custom_call.1} parent=1 // pred_region
      %177 = dma.done [#allocation4], 256
    $region29: #{tpu_custom_call.1} parent=1 // pred_fallthru
      _
    %178 = vsyncpa [#allocation3], 1
    %179 = vsyncpa [#allocation6], 1
    %180 = vsyncpa [#allocation4], 1

</llo_original>
